<compile_context>
chip_gen: v7x
topology: tpu7x:2x2x1
jax: 0.10.0
libtpu: 0.0.40
codegen_flags: <defaults>
</compile_context>

<pallas_src>
import functools

import jax
import jax.numpy as jnp
import numpy as np
from jax.experimental import pallas as pl
from jax.experimental.pallas import tpu as pltpu


def _round_up(x, m):
    return ((x + m - 1) // m) * m


def _stats_kernel(logits_ref, dist_ref, labels_ref, out_ref,
                  inter_acc, sump_acc, sumt_acc, bnd_acc,
                  *, n_valid, s_tile, approx_recip):
    """Accumulates per-class [intersection, sum_p, sum_t, boundary] for one batch item."""
    t = pl.program_id(1)

    @pl.when(t == 0)
    def _():
        inter_acc[...] = jnp.zeros_like(inter_acc)
        sump_acc[...] = jnp.zeros_like(sump_acc)
        sumt_acc[...] = jnp.zeros_like(sumt_acc)
        bnd_acc[...] = jnp.zeros_like(bnd_acc)

    x = logits_ref[...].astype(jnp.float32)      # (C, S_TILE, 128)
    dmap = dist_ref[...].astype(jnp.float32)     # (C, S_TILE, 128)
    lbl = labels_ref[...]                        # (S_TILE, 128) int32

    c, s, l = x.shape

    # Validity mask for the (possibly partial / OOB) trailing tile.
    row = jax.lax.broadcasted_iota(jnp.int32, (s, l), 0) + t * s_tile
    lane = jax.lax.broadcasted_iota(jnp.int32, (s, l), 1)
    valid = (row * l + lane) < n_valid           # (S_TILE, 128) bool
    validf = valid.astype(jnp.float32)

    # Mask BEFORE exp: trailing block may contain garbage (possibly inf/NaN).
    x = jnp.where(valid[None], x, 0.0)
    dmap = jnp.where(valid[None], dmap, 0.0)

    # Softmax over the channel axis: element-wise across C full vregs (VPU only).
    m = jnp.max(x, axis=0, keepdims=True)
    e = jnp.exp(x - m)
    denom = jnp.sum(e, axis=0, keepdims=True)
    # approx=True would move the divide onto the EUP, but perturbs the softmax by
    # ~1e-4 (fails the 1e-5 reference check); the kernel is HBM-bound anyway.
    p = e * pl.reciprocal(denom, approx=approx_recip)
    p = p * validf[None]                         # zero out padded voxels

    cls = jax.lax.broadcasted_iota(jnp.int32, (c, s, l), 0)
    onehot = jnp.where(lbl[None] == cls, validf[None], 0.0)

    # Per-step partial reduce: only 8-aligned sublane slices + vreg adds (VPU),
    # no per-step XLU reduction and no narrow masked stores.
    def partial_sum(v):                          # (C, S_TILE, 128) -> (C, 8, 128)
        acc = v[:, 0:8, :]
        for k in range(1, s // 8):
            acc = acc + v[:, k * 8:(k + 1) * 8, :]
        return acc

    inter_acc[...] += partial_sum(p * onehot)
    sump_acc[...] += partial_sum(p)
    sumt_acc[...] += partial_sum(onehot)
    bnd_acc[...] += partial_sum(p * dmap)        # class 0 dropped later in JAX

    @pl.when(t == pl.num_programs(1) - 1)
    def _():
        def reduce_c1(acc_ref):                  # (C, 8, 128) -> (C, 1)
            r = jnp.sum(acc_ref[...], axis=2, keepdims=True)   # (C, 8, 1)
            return jnp.sum(r, axis=1)                          # (C, 1)

        out_ref[...] = jnp.concatenate(
            [reduce_c1(inter_acc), reduce_c1(sump_acc),
             reduce_c1(sumt_acc), reduce_c1(bnd_acc)], axis=1)


def _run_stats_kernel(logits, dist, labels, n_valid, s_tile, approx_recip):
    b, c, s_total, _ = logits.shape
    n_tiles = pl.cdiv(s_total, s_tile)
    kernel = functools.partial(_stats_kernel, n_valid=n_valid, s_tile=s_tile,
                               approx_recip=approx_recip)
    return pl.pallas_call(
        kernel,
        out_shape=jax.ShapeDtypeStruct((b, c, 4), jnp.float32),
        grid=(b, n_tiles),
        in_specs=[
            pl.BlockSpec((None, c, s_tile, 128), lambda bi, ti: (bi, 0, ti, 0)),
            pl.BlockSpec((None, c, s_tile, 128), lambda bi, ti: (bi, 0, ti, 0)),
            pl.BlockSpec((None, s_tile, 128), lambda bi, ti: (bi, ti, 0)),
        ],
        out_specs=pl.BlockSpec((None, c, 4), lambda bi, ti: (bi, 0, 0)),
        scratch_shapes=[
            pltpu.VMEM((c, 8, 128), jnp.float32),
            pltpu.VMEM((c, 8, 128), jnp.float32),
            pltpu.VMEM((c, 8, 128), jnp.float32),
            pltpu.VMEM((c, 8, 128), jnp.float32),
        ],
        compiler_params=pltpu.CompilerParams(
            # batch axis parallel (megacore / v7x 2xTC), voxel tiles = reduction.
            dimension_semantics=("parallel", "arbitrary")),
    )(logits, dist, labels)


def joint_dice_boundary_loss(inputs, targets, *, n_classes, tile_voxels=32768,
                             smooth=1e-5, approx_recip=False):
    """Mirrors JointDiceBoundaryLoss.forward(inputs, (labels, dist_maps)).

    tile_voxels: voxels streamed per grid step (multiple of 1024 recommended).
    Default 32768 keeps the double-buffered working set well under the 16 MiB
    v5e scoped-VMEM default while being large enough to sit near HBM roofline.
    bf16 logits / dist_maps are accepted (upcast to f32 inside the kernel).
    """
    labels, dist_maps = targets
    b, c, d, w, h = inputs.shape
    assert c == n_classes
    n = d * w * h                         # voxels per sample
    n_pad = _round_up(n, 128)

    # Free (contiguous) reshapes — no transpose, no full-array pad.
    logits = inputs.reshape(b, c, n)
    dist = dist_maps.reshape(b, c, n)
    lbl = labels.reshape(b, n).astype(jnp.int32)
    if n_pad != n:
        # Rare path: spatial volume not lane-aligned; costs one small copy.
        pad = n_pad - n
        logits = jnp.pad(logits, ((0, 0), (0, 0), (0, pad)))
        dist = jnp.pad(dist, ((0, 0), (0, 0), (0, pad)))
        lbl = jnp.pad(lbl, ((0, 0), (0, pad)))

    s_total = n_pad // 128
    logits = logits.reshape(b, c, s_total, 128)
    dist = dist.reshape(b, c, s_total, 128)
    lbl = lbl.reshape(b, s_total, 128)

    # Tile (in 128-voxel rows): multiple of 8 sublanes, clamped to the volume.
    s_tile = max(8, tile_voxels // 128)
    s_tile = _round_up(s_tile, 8)
    s_tile = min(s_tile, _round_up(s_total, 8))

    stats = _run_stats_kernel(logits, dist, lbl, n, s_tile, approx_recip)  # (B, C, 4)

    inter = jnp.sum(stats[:, :, 0], axis=0)
    sum_p = jnp.sum(stats[:, :, 1], axis=0)
    sum_t = jnp.sum(stats[:, :, 2], axis=0)
    bnd = stats[:, :, 3]                  # (B, C)

    # TODO(synk): SoftDiceLoss source was not provided; this uses the standard
    # soft-dice (softmax probs vs one-hot labels, per class over whole batch).
    dice_per_class = (2.0 * inter + smooth) / (sum_p + sum_t + smooth)
    dice_loss = 1.0 - jnp.mean(dice_per_class)

    # SurfaceLoss: mean over (B, C-1, D, W, H) of softmax(inputs)[:,1:] * dist_maps[:,1:].
    # Class-0 boundary term is discarded here rather than sliced in HBM (a
    # wrapper-side dist[:, 1:] slice would materialize an extra HBM copy that
    # costs more bandwidth than it saves).
    boundary_loss = jnp.sum(bnd[:, 1:]) / (b * (c - 1) * d * w * h)
    return {"dice_loss": dice_loss, "boundary_loss": boundary_loss}


def _reference(inputs, labels, dist_maps, smooth=1e-5):
    """Pure-JAX reference for sanity checking."""
    b, c, d, w, h = inputs.shape
    p = jax.nn.softmax(inputs, axis=1)
    onehot = jax.nn.one_hot(labels, c, axis=1, dtype=jnp.float32)
    inter = jnp.sum(p * onehot, axis=(0, 2, 3, 4))
    sum_p = jnp.sum(p, axis=(0, 2, 3, 4))
    sum_t = jnp.sum(onehot, axis=(0, 2, 3, 4))
    dice = (2.0 * inter + smooth) / (sum_p + sum_t + smooth)
    dice_loss = 1.0 - jnp.mean(dice)
    boundary_loss = jnp.mean(p[:, 1:] * dist_maps[:, 1:])
    return dice_loss, boundary_loss


if __name__ == "__main__":
    n_classes = 4
    B, C, D, W, H = 2, n_classes, 4, 16, 16

    key = jax.random.PRNGKey(0)
    k1, k2, k3 = jax.random.split(key, 3)
    inputs = jax.random.normal(k1, (B, C, D, W, H), dtype=jnp.float32)
    labels = jax.random.randint(k2, (B, D, W, H), 0, n_classes, dtype=jnp.int32)
    dist_maps = jax.random.normal(k3, (B, C, D, W, H), dtype=jnp.float32)

    losses = joint_dice_boundary_loss(inputs, (labels, dist_maps), n_classes=n_classes)
    losses = jax.tree_util.tree_map(jax.block_until_ready, losses)

    ref_dice, ref_bnd = _reference(inputs, labels, dist_maps)
    np.testing.assert_allclose(np.asarray(losses["dice_loss"]), np.asarray(ref_dice),
                               rtol=1e-5, atol=1e-5)
    np.testing.assert_allclose(np.asarray(losses["boundary_loss"]), np.asarray(ref_bnd),
                               rtol=1e-5, atol=1e-5)

    print("KERNEL_OK")
</pallas_src>

<mosaic_0001>
module attributes {stable_mosaic.version = 11 : i64} {
  func.func @_stats_kernel(%arg0: i32, %arg1: i32, %arg2: memref<1x4x8x128xf32, #tpu.memory_space<vmem>>, %arg3: memref<1x4x8x128xf32, #tpu.memory_space<vmem>>, %arg4: memref<1x8x128xi32, #tpu.memory_space<vmem>>, %arg5: memref<1x4x4xf32, #tpu.memory_space<vmem>>, %arg6: memref<4x8x128xf32, #tpu.memory_space<vmem>>, %arg7: memref<4x8x128xf32, #tpu.memory_space<vmem>>, %arg8: memref<4x8x128xf32, #tpu.memory_space<vmem>>, %arg9: memref<4x8x128xf32, #tpu.memory_space<vmem>>) attributes {dimension_semantics = [#tpu.dimension_semantics<parallel>, #tpu.dimension_semantics<arbitrary>], iteration_bounds = array<i64: 2, 1>, scalar_prefetch = 0 : i64, scratch_operands = 4 : i64, tpu.core_type = #tpu.core_type<tc>, window_params = [{transform_indices = @transform_0, window_bounds = array<i64: 1, 4, 8, 128>}, {transform_indices = @transform_1, window_bounds = array<i64: 1, 4, 8, 128>}, {transform_indices = @transform_2, window_bounds = array<i64: 1, 8, 128>}, {transform_indices = @transform_3, window_bounds = array<i64: 1, 4, 4>}]} {
    %c0_i32 = arith.constant 0 : i32
    %0 = arith.cmpi eq, %arg1, %c0_i32 : i32
    %1 = arith.extui %0 : i1 to i32
    %c0_i32_0 = arith.constant 0 : i32
    %2 = arith.cmpi ne, %1, %c0_i32_0 : i32
    scf.if %2 {
      %cst_41 = arith.constant 0.000000e+00 : f32
      %70 = vector.broadcast %cst_41 : f32 to vector<4x8x128xf32>
      %c0_42 = arith.constant 0 : index
      %c0_43 = arith.constant 0 : index
      %c0_44 = arith.constant 0 : index
      %71 = vector.load %arg6[%c0_42, %c0_43, %c0_44] : memref<4x8x128xf32, #tpu.memory_space<vmem>>, vector<4x8x128xf32>
      tpu.vector_store %arg6[%c0_42, %c0_43, %c0_44], %70 {strides = array<i32>} : memref<4x8x128xf32, #tpu.memory_space<vmem>>, vector<4x8x128xf32>,
      %cst_45 = arith.constant 0.000000e+00 : f32
      %72 = vector.broadcast %cst_45 : f32 to vector<4x8x128xf32>
      %c0_46 = arith.constant 0 : index
      %c0_47 = arith.constant 0 : index
      %c0_48 = arith.constant 0 : index
      %73 = vector.load %arg7[%c0_46, %c0_47, %c0_48] : memref<4x8x128xf32, #tpu.memory_space<vmem>>, vector<4x8x128xf32>
      tpu.vector_store %arg7[%c0_46, %c0_47, %c0_48], %72 {strides = array<i32>} : memref<4x8x128xf32, #tpu.memory_space<vmem>>, vector<4x8x128xf32>,
      %cst_49 = arith.constant 0.000000e+00 : f32
      %74 = vector.broadcast %cst_49 : f32 to vector<4x8x128xf32>
      %c0_50 = arith.constant 0 : index
      %c0_51 = arith.constant 0 : index
      %c0_52 = arith.constant 0 : index
      %75 = vector.load %arg8[%c0_50, %c0_51, %c0_52] : memref<4x8x128xf32, #tpu.memory_space<vmem>>, vector<4x8x128xf32>
      tpu.vector_store %arg8[%c0_50, %c0_51, %c0_52], %74 {strides = array<i32>} : memref<4x8x128xf32, #tpu.memory_space<vmem>>, vector<4x8x128xf32>,
      %cst_53 = arith.constant 0.000000e+00 : f32
      %76 = vector.broadcast %cst_53 : f32 to vector<4x8x128xf32>
      %c0_54 = arith.constant 0 : index
      %c0_55 = arith.constant 0 : index
      %c0_56 = arith.constant 0 : index
      %77 = vector.load %arg9[%c0_54, %c0_55, %c0_56] : memref<4x8x128xf32, #tpu.memory_space<vmem>>, vector<4x8x128xf32>
      tpu.vector_store %arg9[%c0_54, %c0_55, %c0_56], %76 {strides = array<i32>} : memref<4x8x128xf32, #tpu.memory_space<vmem>>, vector<4x8x128xf32>,
    } else {
    }
    %c0 = arith.constant 0 : index
    %c0_1 = arith.constant 0 : index
    %c0_2 = arith.constant 0 : index
    %c0_3 = arith.constant 0 : index
    %3 = vector.load %arg2[%c0, %c0_1, %c0_2, %c0_3] : memref<1x4x8x128xf32, #tpu.memory_space<vmem>>, vector<1x4x8x128xf32>
    %4 = vector.shape_cast %3 : vector<1x4x8x128xf32> to vector<4x8x128xf32>
    %c0_4 = arith.constant 0 : index
    %c0_5 = arith.constant 0 : index
    %c0_6 = arith.constant 0 : index
    %c0_7 = arith.constant 0 : index
    %5 = vector.load %arg3[%c0_4, %c0_5, %c0_6, %c0_7] : memref<1x4x8x128xf32, #tpu.memory_space<vmem>>, vector<1x4x8x128xf32>
    %6 = vector.shape_cast %5 : vector<1x4x8x128xf32> to vector<4x8x128xf32>
    %c0_8 = arith.constant 0 : index
    %c0_9 = arith.constant 0 : index
    %c0_10 = arith.constant 0 : index
    %7 = vector.load %arg4[%c0_8, %c0_9, %c0_10] : memref<1x8x128xi32, #tpu.memory_space<vmem>>, vector<1x8x128xi32>
    %8 = vector.shape_cast %7 : vector<1x8x128xi32> to vector<8x128xi32>
    %9 = tpu.iota {dimensions = array<i32: 0>} : vector<8x128xi32>
    %c8_i32 = arith.constant 8 : i32
    %10 = arith.muli %arg1, %c8_i32 : i32
    %11 = vector.broadcast %10 : i32 to vector<8x128xi32>
    %12 = arith.addi %9, %11 : vector<8x128xi32>
    %13 = tpu.iota {dimensions = array<i32: 1>} : vector<8x128xi32>
    %c128_i32 = arith.constant 128 : i32
    %14 = vector.broadcast %c128_i32 : i32 to vector<8x128xi32>
    %15 = arith.muli %12, %14 : vector<8x128xi32>
    %16 = arith.addi %15, %13 : vector<8x128xi32>
    %c1024_i32 = arith.constant 1024 : i32
    %17 = vector.broadcast %c1024_i32 : i32 to vector<8x128xi32>
    %18 = arith.cmpi slt, %16, %17 : vector<8x128xi32>
    %19 = arith.extui %18 : vector<8x128xi1> to vector<8x128xi32>
    %20 = arith.sitofp %19 : vector<8x128xi32> to vector<8x128xf32>
    %21 = vector.shape_cast %18 : vector<8x128xi1> to vector<1x8x128xi1>
    %cst = arith.constant 0.000000e+00 : f32
    %22 = vector.shape_cast %21 : vector<1x8x128xi1> to vector<1x8x128xi1>
    %23 = vector.broadcast %22 : vector<1x8x128xi1> to vector<4x8x128xi1>
    %24 = vector.broadcast %cst : f32 to vector<4x8x128xf32>
    %25 = arith.select %23, %4, %24 : vector<4x8x128xi1>, vector<4x8x128xf32>
    %26 = vector.shape_cast %18 : vector<8x128xi1> to vector<1x8x128xi1>
    %cst_11 = arith.constant 0.000000e+00 : f32
    %27 = vector.shape_cast %26 : vector<1x8x128xi1> to vector<1x8x128xi1>
    %28 = vector.broadcast %27 : vector<1x8x128xi1> to vector<4x8x128xi1>
    %29 = vector.broadcast %cst_11 : f32 to vector<4x8x128xf32>
    %30 = arith.select %28, %6, %29 : vector<4x8x128xi1>, vector<4x8x128xf32>
    %cst_12 = arith.constant dense<0xFF800000> : vector<8x128xf32>
    %31 = vector.multi_reduction <maximumf>, %25, %cst_12 [0] : vector<4x8x128xf32> to vector<8x128xf32>
    %32 = vector.shape_cast %31 : vector<8x128xf32> to vector<1x8x128xf32>
    %33 = vector.broadcast %32 : vector<1x8x128xf32> to vector<4x8x128xf32>
    %34 = arith.subf %25, %33 : vector<4x8x128xf32>
    %35 = math.exp %34 : vector<4x8x128xf32>
    %cst_13 = arith.constant dense<0.000000e+00> : vector<8x128xf32>
    %36 = vector.multi_reduction <add>, %35, %cst_13 [0] : vector<4x8x128xf32> to vector<8x128xf32>
    %37 = vector.shape_cast %36 : vector<8x128xf32> to vector<1x8x128xf32>
    %38 = tpu.reciprocal %37 : vector<1x8x128xf32> -> vector<1x8x128xf32>
    %39 = vector.broadcast %38 : vector<1x8x128xf32> to vector<4x8x128xf32>
    %40 = arith.mulf %35, %39 : vector<4x8x128xf32>
    %41 = vector.shape_cast %20 : vector<8x128xf32> to vector<1x8x128xf32>
    %42 = vector.broadcast %41 : vector<1x8x128xf32> to vector<4x8x128xf32>
    %43 = arith.mulf %40, %42 : vector<4x8x128xf32>
    %44 = tpu.iota {dimensions = array<i32: 0>} : vector<4x8x128xi32>
    %45 = vector.shape_cast %8 : vector<8x128xi32> to vector<1x8x128xi32>
    %46 = vector.broadcast %45 : vector<1x8x128xi32> to vector<4x8x128xi32>
    %47 = arith.cmpi eq, %46, %44 : vector<4x8x128xi32>
    %48 = vector.shape_cast %20 : vector<8x128xf32> to vector<1x8x128xf32>
    %cst_14 = arith.constant 0.000000e+00 : f32
    %49 = vector.shape_cast %48 : vector<1x8x128xf32> to vector<1x8x128xf32>
    %50 = vector.broadcast %49 : vector<1x8x128xf32> to vector<4x8x128xf32>
    %51 = vector.broadcast %cst_14 : f32 to vector<4x8x128xf32>
    %52 = arith.select %47, %50, %51 : vector<4x8x128xi1>, vector<4x8x128xf32>
    %c0_15 = arith.constant 0 : index
    %c0_16 = arith.constant 0 : index
    %c0_17 = arith.constant 0 : index
    %53 = vector.load %arg6[%c0_15, %c0_16, %c0_17] : memref<4x8x128xf32, #tpu.memory_space<vmem>>, vector<4x8x128xf32>
    %54 = arith.mulf %43, %52 : vector<4x8x128xf32>
    %55 = arith.addf %53, %54 : vector<4x8x128xf32>
    %c0_18 = arith.constant 0 : index
    %c0_19 = arith.constant 0 : index
    %c0_20 = arith.constant 0 : index
    %56 = vector.load %arg6[%c0_18, %c0_19, %c0_20] : memref<4x8x128xf32, #tpu.memory_space<vmem>>, vector<4x8x128xf32>
    tpu.vector_store %arg6[%c0_18, %c0_19, %c0_20], %55 {strides = array<i32>} : memref<4x8x128xf32, #tpu.memory_space<vmem>>, vector<4x8x128xf32>,
    %c0_21 = arith.constant 0 : index
    %c0_22 = arith.constant 0 : index
    %c0_23 = arith.constant 0 : index
    %57 = vector.load %arg7[%c0_21, %c0_22, %c0_23] : memref<4x8x128xf32, #tpu.memory_space<vmem>>, vector<4x8x128xf32>
    %58 = arith.addf %57, %43 : vector<4x8x128xf32>
    %c0_24 = arith.constant 0 : index
    %c0_25 = arith.constant 0 : index
    %c0_26 = arith.constant 0 : index
    %59 = vector.load %arg7[%c0_24, %c0_25, %c0_26] : memref<4x8x128xf32, #tpu.memory_space<vmem>>, vector<4x8x128xf32>
    tpu.vector_store %arg7[%c0_24, %c0_25, %c0_26], %58 {strides = array<i32>} : memref<4x8x128xf32, #tpu.memory_space<vmem>>, vector<4x8x128xf32>,
    %c0_27 = arith.constant 0 : index
    %c0_28 = arith.constant 0 : index
    %c0_29 = arith.constant 0 : index
    %60 = vector.load %arg8[%c0_27, %c0_28, %c0_29] : memref<4x8x128xf32, #tpu.memory_space<vmem>>, vector<4x8x128xf32>
    %61 = arith.addf %60, %52 : vector<4x8x128xf32>
    %c0_30 = arith.constant 0 : index
    %c0_31 = arith.constant 0 : index
    %c0_32 = arith.constant 0 : index
    %62 = vector.load %arg8[%c0_30, %c0_31, %c0_32] : memref<4x8x128xf32, #tpu.memory_space<vmem>>, vector<4x8x128xf32>
    tpu.vector_store %arg8[%c0_30, %c0_31, %c0_32], %61 {strides = array<i32>} : memref<4x8x128xf32, #tpu.memory_space<vmem>>, vector<4x8x128xf32>,
    %c0_33 = arith.constant 0 : index
    %c0_34 = arith.constant 0 : index
    %c0_35 = arith.constant 0 : index
    %63 = vector.load %arg9[%c0_33, %c0_34, %c0_35] : memref<4x8x128xf32, #tpu.memory_space<vmem>>, vector<4x8x128xf32>
    %64 = arith.mulf %43, %30 : vector<4x8x128xf32>
    %65 = arith.addf %63, %64 : vector<4x8x128xf32>
    %c0_36 = arith.constant 0 : index
    %c0_37 = arith.constant 0 : index
    %c0_38 = arith.constant 0 : index
    %66 = vector.load %arg9[%c0_36, %c0_37, %c0_38] : memref<4x8x128xf32, #tpu.memory_space<vmem>>, vector<4x8x128xf32>
    tpu.vector_store %arg9[%c0_36, %c0_37, %c0_38], %65 {strides = array<i32>} : memref<4x8x128xf32, #tpu.memory_space<vmem>>, vector<4x8x128xf32>,
    %c0_i32_39 = arith.constant 0 : i32
    %67 = arith.cmpi eq, %arg1, %c0_i32_39 : i32
    %68 = arith.extui %67 : i1 to i32
    %c0_i32_40 = arith.constant 0 : i32
    %69 = arith.cmpi ne, %68, %c0_i32_40 : i32
    scf.if %69 {
      %c0_41 = arith.constant 0 : index
      %c0_42 = arith.constant 0 : index
      %c0_43 = arith.constant 0 : index
      %70 = vector.load %arg6[%c0_41, %c0_42, %c0_43] : memref<4x8x128xf32, #tpu.memory_space<vmem>>, vector<4x8x128xf32>
      %cst_44 = arith.constant dense<0.000000e+00> : vector<4x8xf32>
      %71 = vector.multi_reduction <add>, %70, %cst_44 [2] : vector<4x8x128xf32> to vector<4x8xf32>
      %72 = vector.shape_cast %71 : vector<4x8xf32> to vector<4x8x1xf32>
      %cst_45 = arith.constant dense<0.000000e+00> : vector<4x1xf32>
      %73 = vector.multi_reduction <add>, %72, %cst_45 [1] : vector<4x8x1xf32> to vector<4x1xf32>
      %c0_46 = arith.constant 0 : index
      %c0_47 = arith.constant 0 : index
      %c0_48 = arith.constant 0 : index
      %74 = vector.load %arg7[%c0_46, %c0_47, %c0_48] : memref<4x8x128xf32, #tpu.memory_space<vmem>>, vector<4x8x128xf32>
      %cst_49 = arith.constant dense<0.000000e+00> : vector<4x8xf32>
      %75 = vector.multi_reduction <add>, %74, %cst_49 [2] : vector<4x8x128xf32> to vector<4x8xf32>
      %76 = vector.shape_cast %75 : vector<4x8xf32> to vector<4x8x1xf32>
      %cst_50 = arith.constant dense<0.000000e+00> : vector<4x1xf32>
      %77 = vector.multi_reduction <add>, %76, %cst_50 [1] : vector<4x8x1xf32> to vector<4x1xf32>
      %c0_51 = arith.constant 0 : index
      %c0_52 = arith.constant 0 : index
      %c0_53 = arith.constant 0 : index
      %78 = vector.load %arg8[%c0_51, %c0_52, %c0_53] : memref<4x8x128xf32, #tpu.memory_space<vmem>>, vector<4x8x128xf32>
      %cst_54 = arith.constant dense<0.000000e+00> : vector<4x8xf32>
      %79 = vector.multi_reduction <add>, %78, %cst_54 [2] : vector<4x8x128xf32> to vector<4x8xf32>
      %80 = vector.shape_cast %79 : vector<4x8xf32> to vector<4x8x1xf32>
      %cst_55 = arith.constant dense<0.000000e+00> : vector<4x1xf32>
      %81 = vector.multi_reduction <add>, %80, %cst_55 [1] : vector<4x8x1xf32> to vector<4x1xf32>
      %c0_56 = arith.constant 0 : index
      %c0_57 = arith.constant 0 : index
      %c0_58 = arith.constant 0 : index
      %82 = vector.load %arg9[%c0_56, %c0_57, %c0_58] : memref<4x8x128xf32, #tpu.memory_space<vmem>>, vector<4x8x128xf32>
      %cst_59 = arith.constant dense<0.000000e+00> : vector<4x8xf32>
      %83 = vector.multi_reduction <add>, %82, %cst_59 [2] : vector<4x8x128xf32> to vector<4x8xf32>
      %84 = vector.shape_cast %83 : vector<4x8xf32> to vector<4x8x1xf32>
      %cst_60 = arith.constant dense<0.000000e+00> : vector<4x1xf32>
      %85 = vector.multi_reduction <add>, %84, %cst_60 [1] : vector<4x8x1xf32> to vector<4x1xf32>
      %86 = tpu.concatenate %73, %77, %81, %85 in 1 : vector<4x1xf32>, vector<4x1xf32>, vector<4x1xf32>, vector<4x1xf32> -> vector<4x4xf32>
      %c0_61 = arith.constant 0 : index
      %c0_62 = arith.constant 0 : index
      %c0_63 = arith.constant 0 : index
      %87 = vector.load %arg5[%c0_61, %c0_62, %c0_63] : memref<1x4x4xf32, #tpu.memory_space<vmem>>, vector<1x4x4xf32>
      %88 = vector.shape_cast %87 : vector<1x4x4xf32> to vector<4x4xf32>
      %89 = vector.shape_cast %86 : vector<4x4xf32> to vector<1x4x4xf32>
      tpu.vector_store %arg5[%c0_61, %c0_62, %c0_63], %89 {strides = array<i32>} : memref<1x4x4xf32, #tpu.memory_space<vmem>>, vector<1x4x4xf32>,
    } else {
    }
    return
  }
  func.func @transform_0(%arg0: i32, %arg1: i32) -> (i32, i32, i32, i32) {
    %c0_i32 = arith.constant 0 : i32
    %c0_i32_0 = arith.constant 0 : i32
    %c0_i32_1 = arith.constant 0 : i32
    return %arg0, %c0_i32, %arg1, %c0_i32_0 : i32, i32, i32, i32
  }
  func.func @transform_1(%arg0: i32, %arg1: i32) -> (i32, i32, i32, i32) {
    %c0_i32 = arith.constant 0 : i32
    %c0_i32_0 = arith.constant 0 : i32
    %c0_i32_1 = arith.constant 0 : i32
    return %arg0, %c0_i32, %arg1, %c0_i32_0 : i32, i32, i32, i32
  }
  func.func @transform_2(%arg0: i32, %arg1: i32) -> (i32, i32, i32) {
    %c0_i32 = arith.constant 0 : i32
    %c0_i32_0 = arith.constant 0 : i32
    return %arg0, %arg1, %c0_i32 : i32, i32, i32
  }
  func.func @transform_3(%arg0: i32, %arg1: i32) -> (i32, i32, i32) {
    %c0_i32 = arith.constant 0 : i32
    %c0_i32_0 = arith.constant 0 : i32
    %c0_i32_1 = arith.constant 0 : i32
    return %arg0, %c0_i32, %c0_i32_0 : i32, i32, i32
  }
}

</mosaic_0001>

<llo_original>
// kernel: tpu_custom_call.1
$region0: #{tpu_custom_call.1}
  #allocation0 [shape = 'u32[]', space=smem, size = 0x4, offset = 0x4, fixed_abs, tag = 'smem constant byte address 0x4 - core index']
  #allocation1 [shape = 'u32[144,128]{1,0:T(1,128)}', space=vmem, size = 0x12000, scoped, tag = 'internal scratch']
  #allocation2 [shape = 'f32[4,8,128]{2,1,0:T(8,128)}', space=vmem, size = 0x4000, scoped, tag = 'scratch operand']
  #allocation3 [shape = 'f32[4,8,128]{2,1,0:T(8,128)}', space=vmem, size = 0x4000, scoped, tag = 'scratch operand']
  #allocation4 [shape = 'f32[4,8,128]{2,1,0:T(8,128)}', space=vmem, size = 0x4000, scoped, tag = 'scratch operand']
  #allocation5 [shape = 'f32[4,8,128]{2,1,0:T(8,128)}', space=vmem, size = 0x4000, scoped, tag = 'scratch operand']
  %s0 = inlined_call_operand.hbm [shape: f32[2,4,8,128], index: 0, kind: input, shape index: {}]
  %s1 = inlined_call_operand.hbm [shape: f32[2,4,8,128], index: 1, kind: input, shape index: {}]
  %s2 = inlined_call_operand.hbm [shape: s32[2,8,128], index: 2, kind: input, shape index: {}]
  %s3 = inlined_call_operand.hbm [shape: f32[2,4,4], index: 3, kind: output, shape index: {}]
  %s4 = sld [smem:[#allocation0]]
  $region65: #{tpu_custom_call.1} parent=0
    _
  %s6 = ssub.s32 1, %s4
  %s7 = scalar_select 0, %s6, %s4
  $region1: #{tpu_custom_call.1} parent=0
    #allocation6 [shape = 'u8[32768]{0}', space=vmem, size = 0x8000, scoped, tag = 'input window, operand 0']
    #allocation7 [shape = 's32[2]{0}', space=sflag, size = 0x8, scoped, tag = 'scoped memory for tpu_custom_call.1']
    #allocation8 [shape = 's32[2]{0}', space=sflag, size = 0x8, scoped, tag = 'scoped memory for tpu_custom_call.1']
    #allocation9 [shape = 'u8[32768]{0}', space=vmem, size = 0x8000, scoped, tag = 'input window, operand 1']
    #allocation10 [shape = 's32[2]{0}', space=sflag, size = 0x8, scoped, tag = 'scoped memory for tpu_custom_call.1']
    #allocation11 [shape = 'u8[8192]{0}', space=vmem, size = 0x2000, scoped, tag = 'input window, operand 2']
    #allocation12 [shape = 'u8[4096]{0}', space=vmem, size = 0x1000, scoped, tag = 'output window, operand 0']
    %8 = vsyncpa [#allocation7], 0
    %s9 = scalar_lea.sflag [#allocation7], 1
    %10 = vsyncpa %s9, 0
    %11 = vsyncpa [#allocation10], 0
    %s12 = scalar_lea.sflag [#allocation10], 1
    %13 = vsyncpa %s12, 0
    %14 = vsyncpa [#allocation8], 0
    %s15 = scalar_lea.sflag [#allocation8], 1
    %16 = vsyncpa %s15, 0
    loop: start=0, step=1, limit=4
    $region2: #{tpu_custom_call.1} parent=1 // loop_pre_header
      _
    $region3: #{tpu_custom_call.1} parent=1 // loop_header
      %s18 = sphi 0, %s22
      %p19 = scmp.ge.s32.totalorder %s18, 4
      %s25 = sphi 0, %s37
      %s26 = sphi 0, %s33
      %s27 = sphi 0, %s25
      %s28 = sphi 0, %s26
      %s29 = sphi 0, %s27
      %s30 = sphi 0, %s28
      %s42 = sphi 0, %s44
      %s45 = sphi 0, %s42
      %s46 = sphi 0, %s45
      %s62 = sphi 0, %s46
      %s70 = sphi 0, %s72
      %s73 = sphi 0, %s70
      %s74 = sphi 0, %s73
      %s90 = sphi 0, %s74
      %s98 = sphi 0, %s100
      %s101 = sphi 0, %s98
      %s102 = sphi 0, %s101
      %s118 = sphi 0, %s102
      %s124 = sphi 0, %s126
      %s127 = sphi 0, %s124
      %s128 = sphi 0, %s127
      %s144 = sphi 0, %s128
    $region4: #{tpu_custom_call.1} parent=1 // loop_header_branch
      %21 = sbr.rel (%p19) target = $region8
    $region5: #{tpu_custom_call.1} parent=1 // loop_body
      %s23 = ssub.s32 %s18, 1
      %s24 = ssub.s32 %s18, 2
      %s31 = sadd.s32 1, %s26
      %p32 = scmp.ge.s32.totalorder %s31, 1
      %s33 = scalar_select %p32, 0, %s31
      %s34 = sadd.s32 1, %s25
      %s35 = scalar_select %p32, %s34, %s25
      %p36 = scmp.ge.s32.totalorder %s35, 2
      %s37 = scalar_select %p36, 0, %s35
      %s38 = ssub.s32 %s25, %s37
      %s39 = ssub.s32 %s26, %s33
      %s40 = sor.u32 %s38, %s39
      %p41 = scmp.eq.s32.totalorder %s40, 0
      %s43 = sadd.s32 %s42, 1
      %s44 = scalar_select %p41, %s42, %s43
      %p47 = pneg %p41
      %p48 = scmp.eq.s32.totalorder %s18, 1
      %p49 = por %p47, %p48
      %p50 = scmp.ne.s32.totalorder %s42, %s45
      %p51 = scmp.eq.s32.totalorder %s18, 0
      %p52 = por %p50, %p51
      %p53 = scmp.ne.s32.totalorder %s42, %s45
      %p54 = scmp.eq.s32.totalorder %s23, 1
      %p55 = por %p53, %p54
      %p56 = scmp.ne.s32.totalorder %s45, %s46
      %p57 = scmp.eq.s32.totalorder %s23, 0
      %p58 = por %p56, %p57
      %p59 = scmp.ne.s32.totalorder %s45, %s46
      %p60 = scmp.eq.s32.totalorder %s24, 1
      %p61 = por %p59, %p60
      %p63 = scmp.ne.s32.totalorder %s46, %s62
      %p64 = scmp.eq.s32.totalorder %s24, 0
      %p65 = por %p63, %p64
      %s66 = ssub.s32 %s25, %s37
      %s67 = ssub.s32 %s26, %s33
      %s68 = sor.u32 %s66, %s67
      %p69 = scmp.eq.s32.totalorder %s68, 0
      %s71 = sadd.s32 %s70, 1
      %s72 = scalar_select %p69, %s70, %s71
      %p75 = pneg %p69
      %p76 = scmp.eq.s32.totalorder %s18, 1
      %p77 = por %p75, %p76
      %p78 = scmp.ne.s32.totalorder %s70, %s73
      %p79 = scmp.eq.s32.totalorder %s18, 0
      %p80 = por %p78, %p79
      %p81 = scmp.ne.s32.totalorder %s70, %s73
      %p82 = scmp.eq.s32.totalorder %s23, 1
      %p83 = por %p81, %p82
      %p84 = scmp.ne.s32.totalorder %s73, %s74
      %p85 = scmp.eq.s32.totalorder %s23, 0
      %p86 = por %p84, %p85
      %p87 = scmp.ne.s32.totalorder %s73, %s74
      %p88 = scmp.eq.s32.totalorder %s24, 1
      %p89 = por %p87, %p88
      %p91 = scmp.ne.s32.totalorder %s74, %s90
      %p92 = scmp.eq.s32.totalorder %s24, 0
      %p93 = por %p91, %p92
      %s94 = ssub.s32 %s25, %s37
      %s95 = ssub.s32 %s26, %s33
      %s96 = sor.u32 %s94, %s95
      %p97 = scmp.eq.s32.totalorder %s96, 0
      %s99 = sadd.s32 %s98, 1
      %s100 = scalar_select %p97, %s98, %s99
      %p103 = pneg %p97
      %p104 = scmp.eq.s32.totalorder %s18, 1
      %p105 = por %p103, %p104
      %p106 = scmp.ne.s32.totalorder %s98, %s101
      %p107 = scmp.eq.s32.totalorder %s18, 0
      %p108 = por %p106, %p107
      %p109 = scmp.ne.s32.totalorder %s98, %s101
      %p110 = scmp.eq.s32.totalorder %s23, 1
      %p111 = por %p109, %p110
      %p112 = scmp.ne.s32.totalorder %s101, %s102
      %p113 = scmp.eq.s32.totalorder %s23, 0
      %p114 = por %p112, %p113
      %p115 = scmp.ne.s32.totalorder %s101, %s102
      %p116 = scmp.eq.s32.totalorder %s24, 1
      %p117 = por %p115, %p116
      %p119 = scmp.ne.s32.totalorder %s102, %s118
      %p120 = scmp.eq.s32.totalorder %s24, 0
      %p121 = por %p119, %p120
      %s122 = ssub.s32 %s25, %s37
      %p123 = scmp.eq.s32.totalorder %s122, 0
      %s125 = sadd.s32 %s124, 1
      %s126 = scalar_select %p123, %s124, %s125
      %p129 = pneg %p123
      %p130 = scmp.eq.s32.totalorder %s18, 1
      %p131 = por %p129, %p130
      %p132 = scmp.ne.s32.totalorder %s124, %s127
      %p133 = scmp.eq.s32.totalorder %s18, 0
      %p134 = por %p132, %p133
      %p135 = scmp.ne.s32.totalorder %s124, %s127
      %p136 = scmp.eq.s32.totalorder %s23, 1
      %p137 = por %p135, %p136
      %p138 = scmp.ne.s32.totalorder %s127, %s128
      %p139 = scmp.eq.s32.totalorder %s23, 0
      %p140 = por %p138, %p139
      %p141 = scmp.ne.s32.totalorder %s127, %s128
      %p142 = scmp.eq.s32.totalorder %s24, 1
      %p143 = por %p141, %p142
      %p145 = scmp.ne.s32.totalorder %s128, %s144
      %p146 = scmp.eq.s32.totalorder %s24, 0
      %p147 = por %p145, %p146
      %p148 = scmp.le.s32.totalorder 1, %s18
      %p149 = scmp.lt.s32.totalorder %s18, 3
      %p150 = pnand %p148, %p149
      %p151 = pneg %p150
      // Predicated region
      $region9: #{tpu_custom_call.1} parent=5 // pred_check
        _
      $region10: #{tpu_custom_call.1} parent=5 // pred_check_branch
        %153 = sbr.rel (%p150) target = $region12
      $region11: #{tpu_custom_call.1} parent=5 // pred_region
        %s154 = ssub.s32 %s18, 1
      $region12: #{tpu_custom_call.1} parent=5 // pred_fallthru
        _
      %p155 = scmp.lt.s32.totalorder %s18, 2
      // Predicated region
      $region13: #{tpu_custom_call.1} parent=5 // pred_check
        %p156 = pneg %p155
      $region14: #{tpu_custom_call.1} parent=5 // pred_check_branch
        %158 = sbr.rel (%p156) target = $region16
      $region15: #{tpu_custom_call.1} parent=5 // pred_region
        // Predicated region
        $region17: #{tpu_custom_call.1} parent=15 // pred_check
          %p159 = pneg %p52
        $region18: #{tpu_custom_call.1} parent=15 // pred_check_branch
          %161 = sbr.rel (%p159) target = $region20
        $region19: #{tpu_custom_call.1} parent=15 // pred_region
          %s162 = sand.u32 %s42, 1
          %s163 = scalar_lea.sflag [#allocation7], %s162
          %s164 = sand.u32 %s42, 1
          %s165 = smul.addr %s164, 32
          %s166 = scalar_lea.vmem [#allocation6], %s165
          %s168 = ssub.s32 512, 512
          %169 = vsyncadd %s163, %s168
          %s170 = smul.addr %s25, 4
          %s171 = sadd.s32 %s26, %s170
          %s172 = smul.addr %s171, 128
          %s173 = scalar_lea.hbm %s0, %s172
          %s174 = sshll.u32 %s166, 4
          %s175 = int_to_ptr.vmem [resolvable:$true] %s174
          %180 = dma.hbm_to_vmem [thread:$0]  %s173, 512, %s175, %s163, 128, 128, 8
        $region20: #{tpu_custom_call.1} parent=15 // pred_fallthru
          _
        // Predicated region
        $region21: #{tpu_custom_call.1} parent=15 // pred_check
          %p181 = pneg %p80
        $region22: #{tpu_custom_call.1} parent=15 // pred_check_branch
          %183 = sbr.rel (%p181) target = $region24
        $region23: #{tpu_custom_call.1} parent=15 // pred_region
          %s184 = sand.u32 %s18, 1
          %s185 = scalar_lea.sflag [#allocation10], %s184
          %s186 = sand.u32 %s70, 1
          %s187 = smul.addr %s186, 32
          %s188 = scalar_lea.vmem [#allocation9], %s187
          %s190 = ssub.s32 512, 512
          %191 = vsyncadd %s185, %s190
          %s192 = smul.addr %s25, 4
          %s193 = sadd.s32 %s26, %s192
          %s194 = smul.addr %s193, 128
          %s195 = scalar_lea.hbm %s1, %s194
          %s196 = sshll.u32 %s188, 4
          %s197 = int_to_ptr.vmem [resolvable:$true] %s196
          %202 = dma.hbm_to_vmem [thread:$0]  %s195, 512, %s197, %s185, 128, 128, 8
        $region24: #{tpu_custom_call.1} parent=15 // pred_fallthru
          _
        // Predicated region
        $region25: #{tpu_custom_call.1} parent=15 // pred_check
          %p203 = pneg %p108
        $region26: #{tpu_custom_call.1} parent=15 // pred_check_branch
          %205 = sbr.rel (%p203) target = $region28
        $region27: #{tpu_custom_call.1} parent=15 // pred_region
          %s206 = sand.u32 %s18, 1
          %s207 = scalar_lea.sflag [#allocation10], %s206
          %s208 = sand.u32 %s98, 1
          %s209 = smul.addr %s208, 8
          %s210 = scalar_lea.vmem [#allocation11], %s209
          %s212 = ssub.s32 128, 128
          %213 = vsyncadd %s207, %s212
          %s214 = sadd.s32 %s26, %s25
          %s215 = smul.addr %s214, 128
          %s216 = scalar_lea.hbm %s2, %s215
          %s218 = sshll.u32 %s210, 4
          %s219 = int_to_ptr.vmem [resolvable:$true] %s218
          %221 = dma.hbm_to_vmem [thread:$0]  %s216, 128, %s219, %s207
        $region28: #{tpu_custom_call.1} parent=15 // pred_fallthru
          _
      $region16: #{tpu_custom_call.1} parent=5 // pred_fallthru
        _
      %p222 = scmp.le.s32.totalorder 1, %s18
      %p223 = scmp.lt.s32.totalorder %s18, 3
      %p224 = pnand %p222, %p223
      %p225 = pneg %p224
      // Predicated region
      $region29: #{tpu_custom_call.1} parent=5 // pred_check
        _
      $region30: #{tpu_custom_call.1} parent=5 // pred_check_branch
        %227 = sbr.rel (%p224) target = $region32
      $region31: #{tpu_custom_call.1} parent=5 // pred_region
        %s228 = ssub.s32 %s18, 1
        %s229 = sand.u32 %s45, 1
        %s230 = scalar_lea.sflag [#allocation7], %s229
        %s231 = sand.u32 %s45, 1
        %s232 = smul.addr %s231, 32
        %s233 = scalar_lea.vmem [#allocation6], %s232
        // Predicated region
        $region33: #{tpu_custom_call.1} parent=31 // pred_check
          %p234 = pneg %p58
        $region34: #{tpu_custom_call.1} parent=31 // pred_check_branch
          %236 = sbr.rel (%p234) target = $region36
        $region35: #{tpu_custom_call.1} parent=31 // pred_region
          %237 = dma.done %s230, 512
        $region36: #{tpu_custom_call.1} parent=31 // pred_fallthru
          _
        %s238 = sand.u32 %s23, 1
        %s239 = scalar_lea.sflag [#allocation10], %s238
        %s240 = sand.u32 %s73, 1
        %s241 = smul.addr %s240, 32
        %s242 = scalar_lea.vmem [#allocation9], %s241
        // Predicated region
        $region37: #{tpu_custom_call.1} parent=31 // pred_check
          %p243 = pneg %p86
        $region38: #{tpu_custom_call.1} parent=31 // pred_check_branch
          %245 = sbr.rel (%p243) target = $region40
        $region39: #{tpu_custom_call.1} parent=31 // pred_region
          %246 = dma.done %s239, 512
        $region40: #{tpu_custom_call.1} parent=31 // pred_fallthru
          _
        %s247 = sand.u32 %s23, 1
        %s248 = scalar_lea.sflag [#allocation10], %s247
        %s249 = sand.u32 %s101, 1
        %s250 = smul.addr %s249, 8
        %s251 = scalar_lea.vmem [#allocation11], %s250
        // Predicated region
        $region41: #{tpu_custom_call.1} parent=31 // pred_check
          %p252 = pneg %p114
        $region42: #{tpu_custom_call.1} parent=31 // pred_check_branch
          %254 = sbr.rel (%p252) target = $region44
        $region43: #{tpu_custom_call.1} parent=31 // pred_region
          %255 = dma.done %s248, 128
        $region44: #{tpu_custom_call.1} parent=31 // pred_fallthru
          _
        %s256 = sand.u32 %s45, 1
        %s257 = scalar_lea.sflag [#allocation7], %s256
        %s258 = sand.u32 %s45, 1
        %s259 = smul.addr %s258, 32
        %s260 = scalar_lea.vmem [#allocation6], %s259
        %p261 = pneg %p58
        %p262 = pneg %p55
        %s263 = sand.u32 %s23, 1
        %s264 = scalar_lea.sflag [#allocation10], %s263
        %s265 = sand.u32 %s73, 1
        %s266 = smul.addr %s265, 32
        %s267 = scalar_lea.vmem [#allocation9], %s266
        %p268 = pneg %p86
        %p269 = pneg %p83
        %s270 = sand.u32 %s23, 1
        %s271 = scalar_lea.sflag [#allocation10], %s270
        %s272 = sand.u32 %s101, 1
        %s273 = smul.addr %s272, 8
        %s274 = scalar_lea.vmem [#allocation11], %s273
        %p275 = pneg %p114
        %p276 = pneg %p111
        %p277 = pneg %p140
        %p278 = pneg %p137
        %s279 = sand.u32 %s127, 1
        %s280 = scalar_lea.sflag [#allocation8], %s279
        %s281 = sand.u32 %s127, 1
        %s282 = smul.addr %s281, 4
        %s283 = scalar_lea.vmem [#allocation12], %s282
        %p284 = scmp.eq.s32.totalorder %s28, 0
        // Predicated region
        $region45: #{tpu_custom_call.1} parent=31 // pred_check
          %p285 = pneg %p284
        $region46: #{tpu_custom_call.1} parent=31 // pred_check_branch
          %287 = sbr.rel (%p285) target = $region48
        $region47: #{tpu_custom_call.1} parent=31 // pred_region
          %288 = vst [vmem:[#allocation2] sm:$0xff] 0.0
          %289 = vst [vmem:[#allocation2 + $0x8] sm:$0xff] 0.0
          %290 = vst [vmem:[#allocation2 + $0x10] sm:$0xff] 0.0
          %291 = vst [vmem:[#allocation2 + $0x18] sm:$0xff] 0.0
          %292 = vst [vmem:[#allocation3] sm:$0xff] 0.0
          %293 = vst [vmem:[#allocation3 + $0x8] sm:$0xff] 0.0
          %294 = vst [vmem:[#allocation3 + $0x10] sm:$0xff] 0.0
          %295 = vst [vmem:[#allocation3 + $0x18] sm:$0xff] 0.0
          %296 = vst [vmem:[#allocation4] sm:$0xff] 0.0
          %297 = vst [vmem:[#allocation4 + $0x8] sm:$0xff] 0.0
          %298 = vst [vmem:[#allocation4 + $0x10] sm:$0xff] 0.0
          %299 = vst [vmem:[#allocation4 + $0x18] sm:$0xff] 0.0
          %300 = vst [vmem:[#allocation5] sm:$0xff] 0.0
          %301 = vst [vmem:[#allocation5 + $0x8] sm:$0xff] 0.0
          %302 = vst [vmem:[#allocation5 + $0x10] sm:$0xff] 0.0
          %303 = vst [vmem:[#allocation5 + $0x18] sm:$0xff] 0.0
        $region48: #{tpu_custom_call.1} parent=31 // pred_fallthru
          _
        %v304 = vld [vmem:[%s233] sm:$0xff]
        %v305 = vld [vmem:[%s233 + $0x8] sm:$0xff]
        %v306 = vld [vmem:[%s233 + $0x10] sm:$0xff]
        %v307 = vld [vmem:[%s233 + $0x18] sm:$0xff]
        %v308 = vld [vmem:[%s242] sm:$0xff]
        %v309 = vld [vmem:[%s242 + $0x8] sm:$0xff]
        %v310 = vld [vmem:[%s242 + $0x10] sm:$0xff]
        %v311 = vld [vmem:[%s242 + $0x18] sm:$0xff]
        %v312 = vld [vmem:[%s251] sm:$0xff]
        %v313 = vlaneseq
        %v314 = vshrl.u32 %v313, 7
        %s315 = smul.u32 %s28, 8
        %v316 = vstv %s315
        %v317 = vadd.s32 %v314, %v316
        %v318 = vlaneseq
        %v319 = vand.u32 %v318, 127
        %v320 = vmul.u32 %v317, 128
        %v321 = vadd.s32 %v320, %v319
        %vm322 = vcmp.lt.s32.totalorder %v321, 1024
        %v323 = vsel %vm322, 1, 0
        %v324 = vcvt.s32.f32 %v323
        %vm325 = vcmp.eq.s32.totalorder %v323, 1
        %v326 = vsel %vm325, %v304, 0.0
        %v327 = vsel %vm325, %v305, 0.0
        %v328 = vsel %vm325, %v306, 0.0
        %v329 = vsel %vm325, %v307, 0.0
        %v330 = vsel %vm325, %v308, 0.0
        %v331 = vsel %vm325, %v309, 0.0
        %v332 = vsel %vm325, %v310, 0.0
        %v333 = vsel %vm325, %v311, 0.0
        %v334 = vmax.f32 %v326, %v327
        %v335 = vmax.f32 %v328, %v329
        %v336 = vmax.f32 %v334, %v335
        %v337 = vsub.f32 %v326, %v336
        %v338 = vsub.f32 %v327, %v336
        %v339 = vsub.f32 %v328, %v336
        %v340 = vsub.f32 %v329, %v336
        %v341 = vmul.f32 %v337, 1.442695
        %v342 = vpow.pop %v341
        %v343 = vmul.f32 %v338, 1.442695
        %v344 = vpow.pop %v343
        %v345 = vmul.f32 %v339, 1.442695
        %v346 = vpow.pop %v345
        %v347 = vmul.f32 %v340, 1.442695
        %v348 = vpow.pop %v347
        %v349 = vadd.f32 %v342, %v344
        %v350 = vadd.f32 %v349, %v346
        %v351 = vadd.f32 %v350, %v348
        %v352 = vrcp.pop %v351
        %v353 = vmul.f32 %v342, %v352
        %v354 = vmul.f32 %v344, %v352
        %v355 = vmul.f32 %v346, %v352
        %v356 = vmul.f32 %v348, %v352
        %v357 = vmul.f32 %v353, %v324
        %v358 = vmul.f32 %v354, %v324
        %v359 = vmul.f32 %v355, %v324
        %v360 = vmul.f32 %v356, %v324
        %vm361 = vcmp.eq.s32.totalorder %v312, 0
        %vm362 = vcmp.eq.s32.totalorder %v312, 1
        %vm363 = vcmp.eq.s32.totalorder %v312, 2
        %vm364 = vcmp.eq.s32.totalorder %v312, 3
        %v365 = vsel %vm361, %v324, 0.0
        %v366 = vsel %vm362, %v324, 0.0
        %v367 = vsel %vm363, %v324, 0.0
        %v368 = vsel %vm364, %v324, 0.0
        %v369 = vld [vmem:[#allocation2] sm:$0xff]
        %v370 = vld [vmem:[#allocation2 + $0x8] sm:$0xff]
        %v371 = vld [vmem:[#allocation2 + $0x10] sm:$0xff]
        %v372 = vld [vmem:[#allocation2 + $0x18] sm:$0xff]
        %v373 = vmul.f32 %v357, %v365
        %v374 = vmul.f32 %v358, %v366
        %v375 = vmul.f32 %v359, %v367
        %v376 = vmul.f32 %v360, %v368
        %v377 = vadd.f32 %v369, %v373
        %v378 = vadd.f32 %v370, %v374
        %v379 = vadd.f32 %v371, %v375
        %v380 = vadd.f32 %v372, %v376
        %381 = vst [vmem:[#allocation2] sm:$0xff] %v377
        %382 = vst [vmem:[#allocation2 + $0x8] sm:$0xff] %v378
        %383 = vst [vmem:[#allocation2 + $0x10] sm:$0xff] %v379
        %384 = vst [vmem:[#allocation2 + $0x18] sm:$0xff] %v380
        %v385 = vld [vmem:[#allocation3] sm:$0xff]
        %v386 = vld [vmem:[#allocation3 + $0x8] sm:$0xff]
        %v387 = vld [vmem:[#allocation3 + $0x10] sm:$0xff]
        %v388 = vld [vmem:[#allocation3 + $0x18] sm:$0xff]
        %v389 = vadd.f32 %v385, %v357
        %v390 = vadd.f32 %v386, %v358
        %v391 = vadd.f32 %v387, %v359
        %v392 = vadd.f32 %v388, %v360
        %393 = vst [vmem:[#allocation3] sm:$0xff] %v389
        %394 = vst [vmem:[#allocation3 + $0x8] sm:$0xff] %v390
        %395 = vst [vmem:[#allocation3 + $0x10] sm:$0xff] %v391
        %396 = vst [vmem:[#allocation3 + $0x18] sm:$0xff] %v392
        %v397 = vld [vmem:[#allocation4] sm:$0xff]
        %v398 = vld [vmem:[#allocation4 + $0x8] sm:$0xff]
        %v399 = vld [vmem:[#allocation4 + $0x10] sm:$0xff]
        %v400 = vld [vmem:[#allocation4 + $0x18] sm:$0xff]
        %v401 = vadd.f32 %v397, %v365
        %v402 = vadd.f32 %v398, %v366
        %v403 = vadd.f32 %v399, %v367
        %v404 = vadd.f32 %v400, %v368
        %405 = vst [vmem:[#allocation4] sm:$0xff] %v401
        %406 = vst [vmem:[#allocation4 + $0x8] sm:$0xff] %v402
        %407 = vst [vmem:[#allocation4 + $0x10] sm:$0xff] %v403
        %408 = vst [vmem:[#allocation4 + $0x18] sm:$0xff] %v404
        %v409 = vld [vmem:[#allocation5] sm:$0xff]
        %v410 = vld [vmem:[#allocation5 + $0x8] sm:$0xff]
        %v411 = vld [vmem:[#allocation5 + $0x10] sm:$0xff]
        %v412 = vld [vmem:[#allocation5 + $0x18] sm:$0xff]
        %v413 = vmul.f32 %v357, %v330
        %v414 = vmul.f32 %v358, %v331
        %v415 = vmul.f32 %v359, %v332
        %v416 = vmul.f32 %v360, %v333
        %v417 = vadd.f32 %v409, %v413
        %v418 = vadd.f32 %v410, %v414
        %v419 = vadd.f32 %v411, %v415
        %v420 = vadd.f32 %v412, %v416
        %421 = vst [vmem:[#allocation5] sm:$0xff] %v417
        %422 = vst [vmem:[#allocation5 + $0x8] sm:$0xff] %v418
        %423 = vst [vmem:[#allocation5 + $0x10] sm:$0xff] %v419
        %424 = vst [vmem:[#allocation5 + $0x18] sm:$0xff] %v420
        // Predicated region
        $region49: #{tpu_custom_call.1} parent=31 // pred_check
          %p425 = pneg %p284
        $region50: #{tpu_custom_call.1} parent=31 // pred_check_branch
          %427 = sbr.rel (%p425) target = $region52
        $region51: #{tpu_custom_call.1} parent=31 // pred_region
          %v428 = vld [vmem:[#allocation2] sm:$0xff]
          %v429 = vld [vmem:[#allocation2 + $0x8] sm:$0xff]
          %v430 = vld [vmem:[#allocation2 + $0x10] sm:$0xff]
          %v431 = vld [vmem:[#allocation2 + $0x18] sm:$0xff]
          %432 = vadd.xlane.f32.xlu0 %v428
          %v433 = vpop.xlane.xlu0 %432
          %434 = vadd.xlane.f32.xlu0 %v429
          %v435 = vpop.xlane.xlu0 %434
          %436 = vadd.xlane.f32.xlu0 %v430
          %v437 = vpop.xlane.xlu0 %436
          %438 = vadd.xlane.f32.xlu0 %v431
          %v439 = vpop.xlane.xlu0 %438
          %v440 = vrot.slane %v433, 4
          %v441 = vadd.f32 %v433, %v440
          %v442 = vrot.slane %v441, 2
          %v443 = vadd.f32 %v441, %v442
          %v444 = vrot.slane %v443, 1
          %v445 = vadd.f32 %v443, %v444
          %v446 = vrot.slane %v435, 4
          %v447 = vadd.f32 %v435, %v446
          %v448 = vrot.slane %v447, 2
          %v449 = vadd.f32 %v447, %v448
          %v450 = vrot.slane %v449, 1
          %v451 = vadd.f32 %v449, %v450
          %v452 = vrot.slane %v437, 4
          %v453 = vadd.f32 %v437, %v452
          %v454 = vrot.slane %v453, 2
          %v455 = vadd.f32 %v453, %v454
          %v456 = vrot.slane %v455, 1
          %v457 = vadd.f32 %v455, %v456
          %v458 = vrot.slane %v439, 4
          %v459 = vadd.f32 %v439, %v458
          %v460 = vrot.slane %v459, 2
          %v461 = vadd.f32 %v459, %v460
          %v462 = vrot.slane %v461, 1
          %v463 = vadd.f32 %v461, %v462
          %v464 = vld [vmem:[#allocation3] sm:$0xff]
          %v465 = vld [vmem:[#allocation3 + $0x8] sm:$0xff]
          %v466 = vld [vmem:[#allocation3 + $0x10] sm:$0xff]
          %v467 = vld [vmem:[#allocation3 + $0x18] sm:$0xff]
          %468 = vadd.xlane.f32.xlu0 %v464
          %v469 = vpop.xlane.xlu0 %468
          %470 = vadd.xlane.f32.xlu0 %v465
          %v471 = vpop.xlane.xlu0 %470
          %472 = vadd.xlane.f32.xlu0 %v466
          %v473 = vpop.xlane.xlu0 %472
          %474 = vadd.xlane.f32.xlu0 %v467
          %v475 = vpop.xlane.xlu0 %474
          %v476 = vrot.slane %v469, 4
          %v477 = vadd.f32 %v469, %v476
          %v478 = vrot.slane %v477, 2
          %v479 = vadd.f32 %v477, %v478
          %v480 = vrot.slane %v479, 1
          %v481 = vadd.f32 %v479, %v480
          %v482 = vrot.slane %v471, 4
          %v483 = vadd.f32 %v471, %v482
          %v484 = vrot.slane %v483, 2
          %v485 = vadd.f32 %v483, %v484
          %v486 = vrot.slane %v485, 1
          %v487 = vadd.f32 %v485, %v486
          %v488 = vrot.slane %v473, 4
          %v489 = vadd.f32 %v473, %v488
          %v490 = vrot.slane %v489, 2
          %v491 = vadd.f32 %v489, %v490
          %v492 = vrot.slane %v491, 1
          %v493 = vadd.f32 %v491, %v492
          %v494 = vrot.slane %v475, 4
          %v495 = vadd.f32 %v475, %v494
          %v496 = vrot.slane %v495, 2
          %v497 = vadd.f32 %v495, %v496
          %v498 = vrot.slane %v497, 1
          %v499 = vadd.f32 %v497, %v498
          %v500 = vld [vmem:[#allocation4] sm:$0xff]
          %v501 = vld [vmem:[#allocation4 + $0x8] sm:$0xff]
          %v502 = vld [vmem:[#allocation4 + $0x10] sm:$0xff]
          %v503 = vld [vmem:[#allocation4 + $0x18] sm:$0xff]
          %504 = vadd.xlane.f32.xlu0 %v500
          %v505 = vpop.xlane.xlu0 %504
          %506 = vadd.xlane.f32.xlu0 %v501
          %v507 = vpop.xlane.xlu0 %506
          %508 = vadd.xlane.f32.xlu0 %v502
          %v509 = vpop.xlane.xlu0 %508
          %510 = vadd.xlane.f32.xlu0 %v503
          %v511 = vpop.xlane.xlu0 %510
          %v512 = vrot.slane %v505, 4
          %v513 = vadd.f32 %v505, %v512
          %v514 = vrot.slane %v513, 2
          %v515 = vadd.f32 %v513, %v514
          %v516 = vrot.slane %v515, 1
          %v517 = vadd.f32 %v515, %v516
          %v518 = vrot.slane %v507, 4
          %v519 = vadd.f32 %v507, %v518
          %v520 = vrot.slane %v519, 2
          %v521 = vadd.f32 %v519, %v520
          %v522 = vrot.slane %v521, 1
          %v523 = vadd.f32 %v521, %v522
          %v524 = vrot.slane %v509, 4
          %v525 = vadd.f32 %v509, %v524
          %v526 = vrot.slane %v525, 2
          %v527 = vadd.f32 %v525, %v526
          %v528 = vrot.slane %v527, 1
          %v529 = vadd.f32 %v527, %v528
          %v530 = vrot.slane %v511, 4
          %v531 = vadd.f32 %v511, %v530
          %v532 = vrot.slane %v531, 2
          %v533 = vadd.f32 %v531, %v532
          %v534 = vrot.slane %v533, 1
          %v535 = vadd.f32 %v533, %v534
          %v536 = vld [vmem:[#allocation5] sm:$0xff]
          %v537 = vld [vmem:[#allocation5 + $0x8] sm:$0xff]
          %v538 = vld [vmem:[#allocation5 + $0x10] sm:$0xff]
          %v539 = vld [vmem:[#allocation5 + $0x18] sm:$0xff]
          %540 = vadd.xlane.f32.xlu0 %v536
          %v541 = vpop.xlane.xlu0 %540
          %542 = vadd.xlane.f32.xlu0 %v537
          %v543 = vpop.xlane.xlu0 %542
          %544 = vadd.xlane.f32.xlu0 %v538
          %v545 = vpop.xlane.xlu0 %544
          %546 = vadd.xlane.f32.xlu0 %v539
          %v547 = vpop.xlane.xlu0 %546
          %v548 = vrot.slane %v541, 4
          %v549 = vadd.f32 %v541, %v548
          %v550 = vrot.slane %v549, 2
          %v551 = vadd.f32 %v549, %v550
          %v552 = vrot.slane %v551, 1
          %v553 = vadd.f32 %v551, %v552
          %v554 = vrot.slane %v543, 4
          %v555 = vadd.f32 %v543, %v554
          %v556 = vrot.slane %v555, 2
          %v557 = vadd.f32 %v555, %v556
          %v558 = vrot.slane %v557, 1
          %v559 = vadd.f32 %v557, %v558
          %v560 = vrot.slane %v545, 4
          %v561 = vadd.f32 %v545, %v560
          %v562 = vrot.slane %v561, 2
          %v563 = vadd.f32 %v561, %v562
          %v564 = vrot.slane %v563, 1
          %v565 = vadd.f32 %v563, %v564
          %v566 = vrot.slane %v547, 4
          %v567 = vadd.f32 %v547, %v566
          %v568 = vrot.slane %v567, 2
          %v569 = vadd.f32 %v567, %v568
          %v570 = vrot.slane %v569, 1
          %v571 = vadd.f32 %v569, %v570
          %vm576 = vcmask 1041409
          %v577 = vsel %vm576, %v451, %v445
          %vm578 = vcmask 1042434
          %v579 = vsel %vm578, %v457, %v577
          %vm580 = vcmask 1043459
          %v581 = vsel %vm580, %v463, %v579
          %v587 = vsel %vm576, %v487, %v481
          %v588 = vsel %vm578, %v493, %v587
          %v589 = vsel %vm580, %v499, %v588
          %v595 = vsel %vm576, %v523, %v517
          %v596 = vsel %vm578, %v529, %v595
          %v597 = vsel %vm580, %v535, %v596
          %v603 = vsel %vm576, %v559, %v553
          %v604 = vsel %vm578, %v565, %v603
          %v605 = vsel %vm580, %v571, %v604
          %vm607 = vcmask 7168
          %v608 = vsel %vm607, %v581, %v589
          %vm609 = vcmask 15360
          %v610 = vsel %vm609, %v608, %v597
          %vm611 = vcmask 23552
          %v612 = vsel %vm611, %v610, %v605
          %vm613 = vcmask 27648
          %614 = vst.msk [vmem:[%s283] sm:$0xf] %vm613, %v612
        $region52: #{tpu_custom_call.1} parent=31 // pred_fallthru
          _
        %s615 = sand.u32 %s127, 1
        %s616 = scalar_lea.sflag [#allocation8], %s615
        %s617 = sand.u32 %s127, 1
        %s618 = smul.addr %s617, 4
        %s619 = scalar_lea.vmem [#allocation12], %s618
        // Predicated region
        $region53: #{tpu_custom_call.1} parent=31 // pred_check
          %p620 = pneg %p137
        $region54: #{tpu_custom_call.1} parent=31 // pred_check_branch
          %622 = sbr.rel (%p620) target = $region56
        $region55: #{tpu_custom_call.1} parent=31 // pred_region
          %s624 = ssub.s32 64, 64
          %625 = vsyncadd %s616, %s624
          %s626 = smul.addr %s27, 64
          %s627 = scalar_lea.hbm %s3, %s626
          %s629 = sshll.u32 %s619, 4
          %s630 = int_to_ptr.vmem [resolvable:$true] %s629
          %632 = dma.vmem_to_hbm [thread:$0]  %s630, 64, %s627, %s616
        $region56: #{tpu_custom_call.1} parent=31 // pred_fallthru
          _
      $region32: #{tpu_custom_call.1} parent=5 // pred_fallthru
        _
      %p633 = scmp.le.s32.totalorder 2, %s18
      // Predicated region
      $region57: #{tpu_custom_call.1} parent=5 // pred_check
        %p634 = pneg %p633
      $region58: #{tpu_custom_call.1} parent=5 // pred_check_branch
        %636 = sbr.rel (%p634) target = $region60
      $region59: #{tpu_custom_call.1} parent=5 // pred_region
        %s637 = ssub.s32 %s18, 2
        // Predicated region
        $region61: #{tpu_custom_call.1} parent=59 // pred_check
          %p638 = pneg %p143
        $region62: #{tpu_custom_call.1} parent=59 // pred_check_branch
          %640 = sbr.rel (%p638) target = $region64
        $region63: #{tpu_custom_call.1} parent=59 // pred_region
          %s641 = sand.u32 %s128, 1
          %s642 = scalar_lea.sflag [#allocation8], %s641
          %s643 = sand.u32 %s128, 1
          %s644 = smul.addr %s643, 4
          %s645 = scalar_lea.vmem [#allocation12], %s644
          %646 = dma.done %s642, 64
        $region64: #{tpu_custom_call.1} parent=59 // pred_fallthru
          _
      $region60: #{tpu_custom_call.1} parent=5 // pred_fallthru
        _
    $region6: #{tpu_custom_call.1} parent=1 // loop_footer
      %s22 = sadd.s32 1, %s18
    $region7: #{tpu_custom_call.1} parent=1 // loop_footer_branch
      %17 = sbr.rel target = $region3
    $region8: #{tpu_custom_call.1} parent=1 // loop_exit
      _
    %647 = vsyncpa [#allocation7], 1
    %s648 = scalar_lea.sflag [#allocation7], 1
    %649 = vsyncpa %s648, 1
    %650 = vsyncpa [#allocation10], 1
    %s651 = scalar_lea.sflag [#allocation10], 1
    %652 = vsyncpa %s651, 1
    %653 = vsyncpa [#allocation8], 1
    %s654 = scalar_lea.sflag [#allocation8], 1
    %655 = vsyncpa %s654, 1

</llo_original>
